<compile_context>
chip_gen: v7x
topology: tpu7x:2x2x1
jax: 0.10.0
libtpu: 0.0.40
codegen_flags: <defaults>
</compile_context>

<pallas_src>
import jax
import jax.numpy as jnp
from jax.experimental import pallas as pl
from jax.experimental.pallas import tpu as pltpu

_EPS = 1e-5
_VMEM_LIMIT = 48 * 1024 * 1024      # explicit scoped-VMEM request (fits all gens)
_TARGET_X_BLOCK = 4 * 1024 * 1024   # ~4 MiB x block per grid step


def _capas_kernel(x_ref, noise_ref, sty_ref, o_ref):
    # x_ref:     (Bt, Ct, HW)  NCHW slab, spatial flattened onto lanes
    # noise_ref: (Bt, 1,  HW)  per-pixel noise (shared across channel tiles)
    # sty_ref:   (Bt, Ct, 3)   [...,0]=noise_weight  [...,1]=style_scale+1  [...,2]=style_bias
    hw = x_ref.shape[-1]

    x = x_ref[...].astype(jnp.float32)
    noise = noise_ref[...].astype(jnp.float32)
    sty = sty_ref[...].astype(jnp.float32)
    nw = sty[:, :, 0:1]
    ys1 = sty[:, :, 1:2]
    yb = sty[:, :, 2:3]

    # NoiseLayer + ReLU in one elementwise sweep.
    x = jnp.maximum(x + noise * nw, 0.0)

    # InstanceNorm2d stats (biased var). Subtract-mean form: x is VMEM-resident,
    # so the extra pass is free of HBM traffic and matches PyTorch numerics.
    inv_hw = 1.0 / float(hw)
    mean = jnp.sum(x, axis=-1, keepdims=True) * inv_hw          # (Bt, Ct, 1)
    xc = x - mean
    var = jnp.sum(xc * xc, axis=-1, keepdims=True) * inv_hw     # (Bt, Ct, 1)
    inv_std = jax.lax.rsqrt(var + _EPS)

    # Normalize + StyleMod folded into one fused multiply-add per element.
    scale = inv_std * ys1                                       # (Bt, Ct, 1)
    o_ref[...] = (xc * scale + yb).astype(o_ref.dtype)


def _pick_tiles(B, C, HW, x_isz, out_isz, noise_isz):
    """Pick (Bt, Ct): dtype-aware, VMEM-budgeted, prefers >=2 parallel steps."""
    sublane = 8 if x_isz >= 4 else (16 if x_isz == 2 else 32)
    ct_cands = [c for c in range(sublane, C + 1, sublane) if C % c == 0]
    if C not in ct_cands:
        ct_cands.append(C)          # full-dim block is always legal
    bt_cands = [b for b in range(1, B + 1) if B % b == 0]

    def est_vmem(bt, ct):
        blk = bt * ct * HW
        return (2 * blk * (x_isz + out_isz)      # double-buffered x + out blocks
                + 2 * bt * HW * noise_isz        # double-buffered noise block
                + 3 * blk * 4                    # f32 temps inside the kernel
                + bt * ct * 3 * 4                # style block (tiny)
                + (1 << 20))                     # slack

    def x_block_bytes(t):
        return t[0] * t[1] * HW * x_isz

    feasible = [(bt, ct) for bt in bt_cands for ct in ct_cands
                if est_vmem(bt, ct) <= _VMEM_LIMIT]
    if not feasible:
        # TODO(synk): HW-tiled two-pass instance-norm path for feature maps where
        # even a single (min Ct, HW) f32 slab exceeds the VMEM budget.
        feasible = [(1, min(ct_cands))]

    # Prefer >=2 grid steps (megacore sharding + DMA/compute overlap) when possible.
    multi = [t for t in feasible if (B // t[0]) * (C // t[1]) >= 2]
    cands = multi if multi else feasible

    under = [t for t in cands if x_block_bytes(t) <= _TARGET_X_BLOCK]
    if under:
        return max(under, key=x_block_bytes)     # biggest block within target
    return min(cands, key=x_block_bytes)         # smallest block above target


def capas_style_mode(x_nchw, dlatents, noise_nchw, noise_weight,
                     lin_weight, lin_bias, *, batch_tile=None, channel_tile=None,
                     out_dtype=None):
    """x_nchw: [B,C,H,W]; dlatents: [B,D]; noise_nchw: [B,1,H,W];
    noise_weight: [C]; lin_weight: [2C,D]; lin_bias: [2C]."""
    B, C, H, W = x_nchw.shape
    D = dlatents.shape[-1]
    HW = H * W
    out_dtype = x_nchw.dtype if out_dtype is None else out_dtype

    # Free reshapes only (no transpose, no extra HBM traffic).
    x = x_nchw.reshape(B, C, HW)
    noise = noise_nchw.reshape(B, 1, HW)

    # Equalized-lr style linear hoisted to one batched XLA GEMM.
    w_mul = 1.0 / float(D) ** 0.5            # gain=1.0, use_wscale=True, lrmul=1
    style = (dlatents.astype(jnp.float32)
             @ (lin_weight.astype(jnp.float32) * w_mul).T
             + lin_bias.astype(jnp.float32))                       # [B, 2C]
    # Merge per-(b,c) scalars into one side input -> one small DMA per step.
    nw_b = jnp.broadcast_to(noise_weight.astype(jnp.float32).reshape(1, C), (B, C))
    sty = jnp.stack([nw_b, style[:, :C] + 1.0, style[:, C:]], axis=-1)  # [B, C, 3]

    x_isz = jnp.dtype(x_nchw.dtype).itemsize
    out_isz = jnp.dtype(out_dtype).itemsize
    n_isz = jnp.dtype(noise_nchw.dtype).itemsize
    Bt, Ct = _pick_tiles(B, C, HW, x_isz, out_isz, n_isz)
    if batch_tile is not None:
        Bt = batch_tile
    if channel_tile is not None:
        Ct = channel_tile
    grid = (B // Bt, C // Ct)
    # Note: HW not a multiple of 128 still compiles (full-dim block) but stores
    # become masked partial vst; real StyleGAN resolutions are lane-aligned.

    out = pl.pallas_call(
        _capas_kernel,
        out_shape=jax.ShapeDtypeStruct((B, C, HW), out_dtype),
        grid_spec=pltpu.PrefetchScalarGridSpec(
            num_scalar_prefetch=0,
            grid=grid,
            in_specs=[
                pl.BlockSpec((Bt, Ct, HW), lambda b, c: (b, c, 0)),  # x
                pl.BlockSpec((Bt, 1, HW), lambda b, c: (b, 0, 0)),   # noise (c-invariant)
                pl.BlockSpec((Bt, Ct, 3), lambda b, c: (b, c, 0)),   # nw | ys+1 | yb
            ],
            out_specs=pl.BlockSpec((Bt, Ct, HW), lambda b, c: (b, c, 0)),
        ),
        compiler_params=pltpu.CompilerParams(
            dimension_semantics=("parallel", "parallel"),
            vmem_limit_bytes=_VMEM_LIMIT,
        ),
    )(x, noise, sty)

    return out.reshape(B, C, H, W)


def _reference(x, dl, noise, nw, w, b):
    """Pure-JAX reference mirroring the PyTorch forward (NCHW)."""
    B, C, H, W = x.shape
    D = dl.shape[-1]
    xn = x + nw.reshape(1, C, 1, 1) * noise
    xr = jnp.maximum(xn, 0.0)
    mean = xr.mean(axis=(2, 3), keepdims=True)
    var = jnp.square(xr - mean).mean(axis=(2, 3), keepdims=True)
    xin = (xr - mean) / jnp.sqrt(var + _EPS)
    style = dl @ (w * (1.0 / float(D) ** 0.5)).T + b    # [B, 2C]
    ys = style[:, :C].reshape(B, C, 1, 1)
    yb = style[:, C:].reshape(B, C, 1, 1)
    return xin * (ys + 1.0) + yb


if __name__ == "__main__":
    B, C, H, W, D = 2, 4, 16, 16, 32

    key = jax.random.PRNGKey(0)
    kx, kdl, knoise, knw, kw = jax.random.split(key, 5)

    x = jax.random.normal(kx, (B, C, H, W), dtype=jnp.float32)
    dlatents = jax.random.normal(kdl, (B, D), dtype=jnp.float32)
    # NoiseLayer draws randn([B,1,H,W]) at forward time; we pass it explicitly.
    noise = jax.random.normal(knoise, (B, 1, H, W), dtype=jnp.float32)

    # Parameters (PyTorch inits noise_weight / bias to zeros; we use small
    # deterministic random values so the full compute path is exercised).
    noise_weight = 0.1 * jax.random.normal(knw, (C,), dtype=jnp.float32)
    lin_weight = jax.random.normal(kw, (2 * C, D), dtype=jnp.float32)  # randn * init_std(=1)
    lin_bias = 0.05 * jnp.arange(2 * C, dtype=jnp.float32)

    out = capas_style_mode(x, dlatents, noise, noise_weight, lin_weight, lin_bias)
    out = jax.block_until_ready(out)

    ref = _reference(x, dlatents, noise, noise_weight, lin_weight, lin_bias)
    assert out.shape == (B, C, H, W)
    assert jnp.allclose(out, ref, rtol=1e-4, atol=1e-4), "mismatch vs reference"

    print("KERNEL_OK")
</pallas_src>

<mosaic_0001>
module attributes {stable_mosaic.version = 11 : i64} {
  func.func @_capas_kernel(%arg0: i32, %arg1: i32, %arg2: memref<1x4x256xf32, #tpu.memory_space<vmem>>, %arg3: memref<1x1x256xf32, #tpu.memory_space<vmem>>, %arg4: memref<1x4x3xf32, #tpu.memory_space<vmem>>, %arg5: memref<1x4x256xf32, #tpu.memory_space<vmem>>) attributes {dimension_semantics = [#tpu.dimension_semantics<parallel>, #tpu.dimension_semantics<parallel>], iteration_bounds = array<i64: 2, 1>, scalar_prefetch = 0 : i64, scratch_operands = 0 : i64, tpu.core_type = #tpu.core_type<tc>, window_params = [{transform_indices = @transform_0, window_bounds = array<i64: 1, 4, 256>}, {transform_indices = @transform_1, window_bounds = array<i64: 1, 1, 256>}, {transform_indices = @transform_2, window_bounds = array<i64: 1, 4, 3>}, {transform_indices = @transform_3, window_bounds = array<i64: 1, 4, 256>}]} {
    %c0 = arith.constant 0 : index
    %c0_0 = arith.constant 0 : index
    %c0_1 = arith.constant 0 : index
    %0 = vector.load %arg2[%c0, %c0_0, %c0_1] : memref<1x4x256xf32, #tpu.memory_space<vmem>>, vector<1x4x256xf32>
    %c0_2 = arith.constant 0 : index
    %c0_3 = arith.constant 0 : index
    %c0_4 = arith.constant 0 : index
    %1 = vector.load %arg3[%c0_2, %c0_3, %c0_4] : memref<1x1x256xf32, #tpu.memory_space<vmem>>, vector<1x1x256xf32>
    %c0_5 = arith.constant 0 : index
    %c0_6 = arith.constant 0 : index
    %c0_7 = arith.constant 0 : index
    %2 = vector.load %arg4[%c0_5, %c0_6, %c0_7] : memref<1x4x3xf32, #tpu.memory_space<vmem>>, vector<1x4x3xf32>
    %3 = vector.extract_strided_slice %2 {offsets = [0, 0, 0], sizes = [1, 4, 1], strides = [1, 1, 1]} : vector<1x4x3xf32> to vector<1x4x1xf32>
    %4 = vector.extract_strided_slice %2 {offsets = [0, 0, 1], sizes = [1, 4, 1], strides = [1, 1, 1]} : vector<1x4x3xf32> to vector<1x4x1xf32>
    %5 = vector.extract_strided_slice %2 {offsets = [0, 0, 2], sizes = [1, 4, 1], strides = [1, 1, 1]} : vector<1x4x3xf32> to vector<1x4x1xf32>
    %6 = vector.broadcast %1 : vector<1x1x256xf32> to vector<1x4x256xf32>
    %7 = vector.broadcast %3 : vector<1x4x1xf32> to vector<1x4x256xf32>
    %8 = arith.mulf %6, %7 : vector<1x4x256xf32>
    %9 = arith.addf %0, %8 : vector<1x4x256xf32>
    %cst = arith.constant 0.000000e+00 : f32
    %10 = vector.broadcast %cst : f32 to vector<1x4x256xf32>
    %11 = arith.maximumf %9, %10 : vector<1x4x256xf32>
    %cst_8 = arith.constant dense<0.000000e+00> : vector<1x4xf32>
    %12 = vector.multi_reduction <add>, %11, %cst_8 [2] : vector<1x4x256xf32> to vector<1x4xf32>
    %13 = vector.shape_cast %12 : vector<1x4xf32> to vector<1x4x1xf32>
    %cst_9 = arith.constant 3.906250e-03 : f32
    %14 = vector.broadcast %cst_9 : f32 to vector<1x4x1xf32>
    %15 = arith.mulf %13, %14 : vector<1x4x1xf32>
    %16 = vector.broadcast %15 : vector<1x4x1xf32> to vector<1x4x256xf32>
    %17 = arith.subf %11, %16 : vector<1x4x256xf32>
    %18 = arith.mulf %17, %17 : vector<1x4x256xf32>
    %cst_10 = arith.constant dense<0.000000e+00> : vector<1x4xf32>
    %19 = vector.multi_reduction <add>, %18, %cst_10 [2] : vector<1x4x256xf32> to vector<1x4xf32>
    %20 = vector.shape_cast %19 : vector<1x4xf32> to vector<1x4x1xf32>
    %cst_11 = arith.constant 3.906250e-03 : f32
    %21 = vector.broadcast %cst_11 : f32 to vector<1x4x1xf32>
    %22 = arith.mulf %20, %21 : vector<1x4x1xf32>
    %cst_12 = arith.constant 9.99999974E-6 : f32
    %23 = vector.broadcast %cst_12 : f32 to vector<1x4x1xf32>
    %24 = arith.addf %22, %23 : vector<1x4x1xf32>
    %25 = math.rsqrt %24 : vector<1x4x1xf32>
    %26 = arith.mulf %25, %4 : vector<1x4x1xf32>
    %27 = vector.broadcast %26 : vector<1x4x1xf32> to vector<1x4x256xf32>
    %28 = arith.mulf %17, %27 : vector<1x4x256xf32>
    %29 = vector.broadcast %5 : vector<1x4x1xf32> to vector<1x4x256xf32>
    %30 = arith.addf %28, %29 : vector<1x4x256xf32>
    %c0_13 = arith.constant 0 : index
    %c0_14 = arith.constant 0 : index
    %c0_15 = arith.constant 0 : index
    %31 = vector.load %arg5[%c0_13, %c0_14, %c0_15] : memref<1x4x256xf32, #tpu.memory_space<vmem>>, vector<1x4x256xf32>
    tpu.vector_store %arg5[%c0_13, %c0_14, %c0_15], %30 {strides = array<i32>} : memref<1x4x256xf32, #tpu.memory_space<vmem>>, vector<1x4x256xf32>,
    return
  }
  func.func @transform_0(%arg0: i32, %arg1: i32) -> (i32, i32, i32) {
    %c0_i32 = arith.constant 0 : i32
    %c0_i32_0 = arith.constant 0 : i32
    return %arg0, %arg1, %c0_i32 : i32, i32, i32
  }
  func.func @transform_1(%arg0: i32, %arg1: i32) -> (i32, i32, i32) {
    %c0_i32 = arith.constant 0 : i32
    %c0_i32_0 = arith.constant 0 : i32
    %c0_i32_1 = arith.constant 0 : i32
    return %arg0, %c0_i32, %c0_i32_0 : i32, i32, i32
  }
  func.func @transform_2(%arg0: i32, %arg1: i32) -> (i32, i32, i32) {
    %c0_i32 = arith.constant 0 : i32
    %c0_i32_0 = arith.constant 0 : i32
    return %arg0, %arg1, %c0_i32 : i32, i32, i32
  }
  func.func @transform_3(%arg0: i32, %arg1: i32) -> (i32, i32, i32) {
    %c0_i32 = arith.constant 0 : i32
    %c0_i32_0 = arith.constant 0 : i32
    return %arg0, %arg1, %c0_i32 : i32, i32, i32
  }
}

</mosaic_0001>

<llo_original>
// kernel: tpu_custom_call.1
$region0: #{tpu_custom_call.1}
  #allocation0 [shape = 'u32[]', space=smem, size = 0x4, offset = 0x4, fixed_abs, tag = 'smem constant byte address 0x4 - core index']
  #allocation1 [shape = 'u32[144,128]{1,0:T(1,128)}', space=vmem, size = 0x12000, scoped, tag = 'internal scratch']
  %s0 = inlined_call_operand.hbm [shape: f32[2,4,256], index: 0, kind: input, shape index: {}]
  %s1 = inlined_call_operand.vmem [shape: f32[2,1,256], index: 1, kind: input, shape index: {}]
  %s2 = inlined_call_operand.vmem [shape: f32[2,4,3], index: 2, kind: input, shape index: {}]
  %s3 = inlined_call_operand.hbm [shape: f32[2,4,256], index: 3, kind: output, shape index: {}]
  %s4 = sld [smem:[#allocation0]]
  $region49: #{tpu_custom_call.1} parent=0
    _
  %s6 = ssub.s32 1, %s4
  %s7 = scalar_select 0, %s6, %s4
  $region1: #{tpu_custom_call.1} parent=0
    #allocation2 [shape = 'u8[8192]{0}', space=vmem, size = 0x2000, scoped, tag = 'input window, operand 0']
    #allocation3 [shape = 's32[2]{0}', space=sflag, size = 0x8, scoped, tag = 'scoped memory for tpu_custom_call.1']
    #allocation4 [shape = 's32[2]{0}', space=sflag, size = 0x8, scoped, tag = 'scoped memory for tpu_custom_call.1']
    #allocation5 [shape = 'u8[8192]{0}', space=vmem, size = 0x2000, scoped, tag = 'output window, operand 0']
    %8 = vsyncpa [#allocation3], 0
    %s9 = scalar_lea.sflag [#allocation3], 1
    %10 = vsyncpa %s9, 0
    %11 = vsyncpa [#allocation4], 0
    %s12 = scalar_lea.sflag [#allocation4], 1
    %13 = vsyncpa %s12, 0
    loop: start=0, step=1, limit=4
    $region2: #{tpu_custom_call.1} parent=1 // loop_pre_header
      _
    $region3: #{tpu_custom_call.1} parent=1 // loop_header
      %s15 = sphi 0, %s19
      %p16 = scmp.ge.s32.totalorder %s15, 4
      %s22 = sphi 0, %s34
      %s23 = sphi 0, %s30
      %s24 = sphi 0, %s22
      %s25 = sphi 0, %s23
      %s26 = sphi 0, %s24
      %s27 = sphi 0, %s25
      %s39 = sphi 0, %s41
      %s42 = sphi 0, %s39
      %s43 = sphi 0, %s42
      %s59 = sphi 0, %s43
      %s65 = sphi 0, %s67
      %s68 = sphi 0, %s65
      %s69 = sphi 0, %s68
      %s85 = sphi 0, %s69
      %s93 = sphi 0, %s95
      %s96 = sphi 0, %s93
      %s97 = sphi 0, %s96
      %s113 = sphi 0, %s97
      %s121 = sphi 0, %s123
      %s124 = sphi 0, %s121
      %s125 = sphi 0, %s124
      %s141 = sphi 0, %s125
    $region4: #{tpu_custom_call.1} parent=1 // loop_header_branch
      %18 = sbr.rel (%p16) target = $region8
    $region5: #{tpu_custom_call.1} parent=1 // loop_body
      %s20 = ssub.s32 %s15, 1
      %s21 = ssub.s32 %s15, 2
      %s28 = sadd.s32 1, %s23
      %p29 = scmp.ge.s32.totalorder %s28, 1
      %s30 = scalar_select %p29, 0, %s28
      %s31 = sadd.s32 1, %s22
      %s32 = scalar_select %p29, %s31, %s22
      %p33 = scmp.ge.s32.totalorder %s32, 2
      %s34 = scalar_select %p33, 0, %s32
      %s35 = ssub.s32 %s22, %s34
      %s36 = ssub.s32 %s23, %s30
      %s37 = sor.u32 %s35, %s36
      %p38 = scmp.eq.s32.totalorder %s37, 0
      %s40 = sadd.s32 %s39, 1
      %s41 = scalar_select %p38, %s39, %s40
      %p44 = pneg %p38
      %p45 = scmp.eq.s32.totalorder %s15, 1
      %p46 = por %p44, %p45
      %p47 = scmp.ne.s32.totalorder %s39, %s42
      %p48 = scmp.eq.s32.totalorder %s15, 0
      %p49 = por %p47, %p48
      %p50 = scmp.ne.s32.totalorder %s39, %s42
      %p51 = scmp.eq.s32.totalorder %s20, 1
      %p52 = por %p50, %p51
      %p53 = scmp.ne.s32.totalorder %s42, %s43
      %p54 = scmp.eq.s32.totalorder %s20, 0
      %p55 = por %p53, %p54
      %p56 = scmp.ne.s32.totalorder %s42, %s43
      %p57 = scmp.eq.s32.totalorder %s21, 1
      %p58 = por %p56, %p57
      %p60 = scmp.ne.s32.totalorder %s43, %s59
      %p61 = scmp.eq.s32.totalorder %s21, 0
      %p62 = por %p60, %p61
      %s63 = ssub.s32 %s22, %s34
      %p64 = scmp.eq.s32.totalorder %s63, 0
      %s66 = sadd.s32 %s65, 1
      %s67 = scalar_select %p64, %s65, %s66
      %p70 = pneg %p64
      %p71 = scmp.eq.s32.totalorder %s15, 1
      %p72 = por %p70, %p71
      %p73 = scmp.ne.s32.totalorder %s65, %s68
      %p74 = scmp.eq.s32.totalorder %s15, 0
      %p75 = por %p73, %p74
      %p76 = scmp.ne.s32.totalorder %s65, %s68
      %p77 = scmp.eq.s32.totalorder %s20, 1
      %p78 = por %p76, %p77
      %p79 = scmp.ne.s32.totalorder %s68, %s69
      %p80 = scmp.eq.s32.totalorder %s20, 0
      %p81 = por %p79, %p80
      %p82 = scmp.ne.s32.totalorder %s68, %s69
      %p83 = scmp.eq.s32.totalorder %s21, 1
      %p84 = por %p82, %p83
      %p86 = scmp.ne.s32.totalorder %s69, %s85
      %p87 = scmp.eq.s32.totalorder %s21, 0
      %p88 = por %p86, %p87
      %s89 = ssub.s32 %s22, %s34
      %s90 = ssub.s32 %s23, %s30
      %s91 = sor.u32 %s89, %s90
      %p92 = scmp.eq.s32.totalorder %s91, 0
      %s94 = sadd.s32 %s93, 1
      %s95 = scalar_select %p92, %s93, %s94
      %p98 = pneg %p92
      %p99 = scmp.eq.s32.totalorder %s15, 1
      %p100 = por %p98, %p99
      %p101 = scmp.ne.s32.totalorder %s93, %s96
      %p102 = scmp.eq.s32.totalorder %s15, 0
      %p103 = por %p101, %p102
      %p104 = scmp.ne.s32.totalorder %s93, %s96
      %p105 = scmp.eq.s32.totalorder %s20, 1
      %p106 = por %p104, %p105
      %p107 = scmp.ne.s32.totalorder %s96, %s97
      %p108 = scmp.eq.s32.totalorder %s20, 0
      %p109 = por %p107, %p108
      %p110 = scmp.ne.s32.totalorder %s96, %s97
      %p111 = scmp.eq.s32.totalorder %s21, 1
      %p112 = por %p110, %p111
      %p114 = scmp.ne.s32.totalorder %s97, %s113
      %p115 = scmp.eq.s32.totalorder %s21, 0
      %p116 = por %p114, %p115
      %s117 = ssub.s32 %s22, %s34
      %s118 = ssub.s32 %s23, %s30
      %s119 = sor.u32 %s117, %s118
      %p120 = scmp.eq.s32.totalorder %s119, 0
      %s122 = sadd.s32 %s121, 1
      %s123 = scalar_select %p120, %s121, %s122
      %p126 = pneg %p120
      %p127 = scmp.eq.s32.totalorder %s15, 1
      %p128 = por %p126, %p127
      %p129 = scmp.ne.s32.totalorder %s121, %s124
      %p130 = scmp.eq.s32.totalorder %s15, 0
      %p131 = por %p129, %p130
      %p132 = scmp.ne.s32.totalorder %s121, %s124
      %p133 = scmp.eq.s32.totalorder %s20, 1
      %p134 = por %p132, %p133
      %p135 = scmp.ne.s32.totalorder %s124, %s125
      %p136 = scmp.eq.s32.totalorder %s20, 0
      %p137 = por %p135, %p136
      %p138 = scmp.ne.s32.totalorder %s124, %s125
      %p139 = scmp.eq.s32.totalorder %s21, 1
      %p140 = por %p138, %p139
      %p142 = scmp.ne.s32.totalorder %s125, %s141
      %p143 = scmp.eq.s32.totalorder %s21, 0
      %p144 = por %p142, %p143
      %p145 = scmp.le.s32.totalorder 1, %s15
      %p146 = scmp.lt.s32.totalorder %s15, 3
      %p147 = pnand %p145, %p146
      %p148 = pneg %p147
      // Predicated region
      $region9: #{tpu_custom_call.1} parent=5 // pred_check
        _
      $region10: #{tpu_custom_call.1} parent=5 // pred_check_branch
        %150 = sbr.rel (%p147) target = $region12
      $region11: #{tpu_custom_call.1} parent=5 // pred_region
        %s151 = ssub.s32 %s15, 1
      $region12: #{tpu_custom_call.1} parent=5 // pred_fallthru
        _
      %p152 = scmp.lt.s32.totalorder %s15, 2
      // Predicated region
      $region13: #{tpu_custom_call.1} parent=5 // pred_check
        %p153 = pneg %p152
      $region14: #{tpu_custom_call.1} parent=5 // pred_check_branch
        %155 = sbr.rel (%p153) target = $region16
      $region15: #{tpu_custom_call.1} parent=5 // pred_region
        // Predicated region
        $region17: #{tpu_custom_call.1} parent=15 // pred_check
          %p156 = pneg %p49
        $region18: #{tpu_custom_call.1} parent=15 // pred_check_branch
          %158 = sbr.rel (%p156) target = $region20
        $region19: #{tpu_custom_call.1} parent=15 // pred_region
          %s159 = sand.u32 %s39, 1
          %s160 = scalar_lea.sflag [#allocation3], %s159
          %s161 = sand.u32 %s39, 1
          %s162 = smul.addr %s161, 8
          %s163 = scalar_lea.vmem [#allocation2], %s162
          %s165 = ssub.s32 128, 128
          %166 = vsyncadd %s160, %s165
          %s167 = smul.addr %s23, 2
          %s168 = smul.addr %s22, 2
          %s169 = sadd.s32 %s167, %s168
          %s170 = smul.addr %s169, 64
          %s171 = scalar_lea.hbm %s0, %s170
          %s173 = sshll.u32 %s163, 4
          %s174 = int_to_ptr.vmem [resolvable:$true] %s173
          %176 = dma.hbm_to_vmem [thread:$0]  %s171, 128, %s174, %s160
        $region20: #{tpu_custom_call.1} parent=15 // pred_fallthru
          _
        // Predicated region
        $region21: #{tpu_custom_call.1} parent=15 // pred_check
          %p177 = pneg %p75
        $region22: #{tpu_custom_call.1} parent=15 // pred_check_branch
          %179 = sbr.rel (%p177) target = $region24
        $region23: #{tpu_custom_call.1} parent=15 // pred_region
          %p180 = scmp.lt.s32.totalorder %s22, 1
          %s181 = scalar_select %p180, %s22, 1
          %s182 = smul.addr %s181, 2
          %s183 = scalar_lea.vmem %s1, %s182
        $region24: #{tpu_custom_call.1} parent=15 // pred_fallthru
          _
        // Predicated region
        $region25: #{tpu_custom_call.1} parent=15 // pred_check
          %p184 = pneg %p103
        $region26: #{tpu_custom_call.1} parent=15 // pred_check_branch
          %186 = sbr.rel (%p184) target = $region28
        $region27: #{tpu_custom_call.1} parent=15 // pred_region
          %p187 = scmp.lt.s32.totalorder %s22, 1
          %s188 = scalar_select %p187, %s22, 1
          %p189 = scmp.lt.s32.totalorder %s23, 0
          %s190 = scalar_select %p189, %s23, 0
          %s191 = sadd.s32 %s190, %s188
          %s192 = smul.addr %s191, 4
          %s193 = scalar_lea.vmem %s2, %s192
        $region28: #{tpu_custom_call.1} parent=15 // pred_fallthru
          _
      $region16: #{tpu_custom_call.1} parent=5 // pred_fallthru
        _
      %p194 = scmp.le.s32.totalorder 1, %s15
      %p195 = scmp.lt.s32.totalorder %s15, 3
      %p196 = pnand %p194, %p195
      %p197 = pneg %p196
      // Predicated region
      $region29: #{tpu_custom_call.1} parent=5 // pred_check
        _
      $region30: #{tpu_custom_call.1} parent=5 // pred_check_branch
        %199 = sbr.rel (%p196) target = $region32
      $region31: #{tpu_custom_call.1} parent=5 // pred_region
        %s200 = ssub.s32 %s15, 1
        %s201 = sand.u32 %s42, 1
        %s202 = scalar_lea.sflag [#allocation3], %s201
        %s203 = sand.u32 %s42, 1
        %s204 = smul.addr %s203, 8
        %s205 = scalar_lea.vmem [#allocation2], %s204
        // Predicated region
        $region33: #{tpu_custom_call.1} parent=31 // pred_check
          %p206 = pneg %p55
        $region34: #{tpu_custom_call.1} parent=31 // pred_check_branch
          %208 = sbr.rel (%p206) target = $region36
        $region35: #{tpu_custom_call.1} parent=31 // pred_region
          %209 = dma.done %s202, 128
        $region36: #{tpu_custom_call.1} parent=31 // pred_fallthru
          _
        %s210 = sand.u32 %s42, 1
        %s211 = scalar_lea.sflag [#allocation3], %s210
        %s212 = sand.u32 %s42, 1
        %s213 = smul.addr %s212, 8
        %s214 = scalar_lea.vmem [#allocation2], %s213
        %p215 = pneg %p55
        %p216 = pneg %p52
        %p217 = scmp.lt.s32.totalorder %s24, 1
        %s218 = scalar_select %p217, %s24, 1
        %s219 = smul.addr %s218, 2
        %s220 = scalar_lea.vmem %s1, %s219
        %p221 = pneg %p81
        %p222 = pneg %p78
        %p223 = scmp.lt.s32.totalorder %s24, 1
        %s224 = scalar_select %p223, %s24, 1
        %p225 = scmp.lt.s32.totalorder %s25, 0
        %s226 = scalar_select %p225, %s25, 0
        %s227 = sadd.s32 %s226, %s224
        %s228 = smul.addr %s227, 4
        %s229 = scalar_lea.vmem %s2, %s228
        %p230 = pneg %p109
        %p231 = pneg %p106
        %p232 = pneg %p137
        %p233 = pneg %p134
        %s234 = sand.u32 %s124, 1
        %s235 = scalar_lea.sflag [#allocation4], %s234
        %s236 = sand.u32 %s124, 1
        %s237 = smul.addr %s236, 8
        %s238 = scalar_lea.vmem [#allocation5], %s237
        %p239 = scmp.lt.s32.totalorder %s24, 1
        %s240 = scalar_select %p239, %s24, 1
        %s241 = smul.addr %s240, 2
        %s242 = scalar_lea.vmem %s1, %s241
        %p243 = scmp.lt.s32.totalorder %s24, 1
        %s244 = scalar_select %p243, %s24, 1
        %p245 = scmp.lt.s32.totalorder %s25, 0
        %s246 = scalar_select %p245, %s25, 0
        %s247 = sadd.s32 %s246, %s244
        %s248 = smul.addr %s247, 4
        %s249 = scalar_lea.vmem %s2, %s248
        %v250 = vld [vmem:[%s205] sm:$0xff]
        %v251 = vld [vmem:[%s242] sm:$0x3]
        %v252 = vld [vmem:[%s249] sm:$0xf]
        %v254 = vlaneseq
        %v255 = vshrl.u32 %v254, 7
        %v256 = vsub.s32 0, %v255
        %v257 = vrot.slane %v251, %v256
        %v258 = vlaneseq
        %v259 = vshrl.u32 %v258, 7
        %v260 = vsub.s32 1, %v259
        %v261 = vrot.slane %v251, %v260
        %265 = vset.pattern.permute.xlu0 0
        %266 = vperm.xlu0 %265, %v252
        %v267 = vpop.permute.xlu0 %266
        %v269 = vmul.f32 %v257, %v267
        %v270 = vmul.f32 %v261, %v267
        %v273 = vcombine.low %v269, %v270
        %v275 = vadd.f32 %v250, %v273
        %v276 = vmax.f32 %v275, 0.0
        %v278 = vcombine.high %v276, %v276
        %vm280 = vcmask 1043456
        %v281 = vsel %vm280, %v276, 0.0
        %v282 = vsel %vm280, %v278, 0.0
        %v283 = vadd.f32 %v281, %v282
        %284 = vadd.xlane.f32.xlu0 %v283
        %v285 = vpop.xlane.xlu0 %284
        %v286 = vmul.f32 %v285, 0.00390625
        %v289 = vunpack.c.l.s4 839922192
        %v290 = vunpack.c.0.s8 %v289
        %v291 = vlaneseq
        %v292 = vshrl.u32 %v291, 7
        %v293 = vsub.s32 %v290, %v292
        %v294 = vrot.slane %v286, %v293
        %v296 = vsub.f32 %v276, %v294
        %v297 = vmul.f32 %v296, %v296
        %v299 = vcombine.high %v297, %v297
        %v301 = vsel %vm280, %v297, 0.0
        %v302 = vsel %vm280, %v299, 0.0
        %v303 = vadd.f32 %v301, %v302
        %304 = vadd.xlane.f32.xlu0 %v303
        %v305 = vpop.xlane.xlu0 %304
        %v306 = vmul.f32 %v305, 0.00390625
        %v307 = vadd.f32 %v306, 1e-05
        %v308 = vrsqrt.pop %v307
        %v309 = vmul.f32 %v308, %v252
        %311 = vset.pattern.permute.xlu0 1
        %312 = vperm.xlu0 %311, %v309
        %v313 = vpop.permute.xlu0 %312
        %v315 = vunpack.c.l.s4 839922192
        %v316 = vunpack.c.0.s8 %v315
        %v317 = vlaneseq
        %v318 = vshrl.u32 %v317, 7
        %v319 = vsub.s32 %v316, %v318
        %v320 = vrot.slane %v313, %v319
        %v322 = vmul.f32 %v296, %v320
        %323 = vset.pattern.permute.xlu0 2
        %324 = vperm.xlu0 %323, %v252
        %v325 = vpop.permute.xlu0 %324
        %v327 = vunpack.c.l.s4 839922192
        %v328 = vunpack.c.0.s8 %v327
        %v329 = vlaneseq
        %v330 = vshrl.u32 %v329, 7
        %v331 = vsub.s32 %v328, %v330
        %v332 = vrot.slane %v325, %v331
        %v334 = vadd.f32 %v322, %v332
        %335 = vst [vmem:[%s238] sm:$0xff] %v334
        %s336 = sand.u32 %s124, 1
        %s337 = scalar_lea.sflag [#allocation4], %s336
        %s338 = sand.u32 %s124, 1
        %s339 = smul.addr %s338, 8
        %s340 = scalar_lea.vmem [#allocation5], %s339
        // Predicated region
        $region37: #{tpu_custom_call.1} parent=31 // pred_check
          %p341 = pneg %p134
        $region38: #{tpu_custom_call.1} parent=31 // pred_check_branch
          %343 = sbr.rel (%p341) target = $region40
        $region39: #{tpu_custom_call.1} parent=31 // pred_region
          %s345 = ssub.s32 128, 128
          %346 = vsyncadd %s337, %s345
          %s347 = smul.addr %s25, 2
          %s348 = smul.addr %s24, 2
          %s349 = sadd.s32 %s347, %s348
          %s350 = smul.addr %s349, 64
          %s351 = scalar_lea.hbm %s3, %s350
          %s353 = sshll.u32 %s340, 4
          %s354 = int_to_ptr.vmem [resolvable:$true] %s353
          %356 = dma.vmem_to_hbm [thread:$0]  %s354, 128, %s351, %s337
        $region40: #{tpu_custom_call.1} parent=31 // pred_fallthru
          _
      $region32: #{tpu_custom_call.1} parent=5 // pred_fallthru
        _
      %p357 = scmp.le.s32.totalorder 2, %s15
      // Predicated region
      $region41: #{tpu_custom_call.1} parent=5 // pred_check
        %p358 = pneg %p357
      $region42: #{tpu_custom_call.1} parent=5 // pred_check_branch
        %360 = sbr.rel (%p358) target = $region44
      $region43: #{tpu_custom_call.1} parent=5 // pred_region
        %s361 = ssub.s32 %s15, 2
        // Predicated region
        $region45: #{tpu_custom_call.1} parent=43 // pred_check
          %p362 = pneg %p140
        $region46: #{tpu_custom_call.1} parent=43 // pred_check_branch
          %364 = sbr.rel (%p362) target = $region48
        $region47: #{tpu_custom_call.1} parent=43 // pred_region
          %s365 = sand.u32 %s125, 1
          %s366 = scalar_lea.sflag [#allocation4], %s365
          %s367 = sand.u32 %s125, 1
          %s368 = smul.addr %s367, 8
          %s369 = scalar_lea.vmem [#allocation5], %s368
          %370 = dma.done %s366, 128
        $region48: #{tpu_custom_call.1} parent=43 // pred_fallthru
          _
      $region44: #{tpu_custom_call.1} parent=5 // pred_fallthru
        _
    $region6: #{tpu_custom_call.1} parent=1 // loop_footer
      %s19 = sadd.s32 1, %s15
    $region7: #{tpu_custom_call.1} parent=1 // loop_footer_branch
      %14 = sbr.rel target = $region3
    $region8: #{tpu_custom_call.1} parent=1 // loop_exit
      _
    %371 = vsyncpa [#allocation3], 1
    %s372 = scalar_lea.sflag [#allocation3], 1
    %373 = vsyncpa %s372, 1
    %374 = vsyncpa [#allocation4], 1
    %s375 = scalar_lea.sflag [#allocation4], 1
    %376 = vsyncpa %s375, 1

</llo_original>
